<compile_context>
chip_gen: v5e
topology: v5e:2x2
jax: 0.10.0
libtpu: 0.0.40
codegen_flags: <defaults>
</compile_context>

<pallas_src>
import jax
import jax.numpy as jnp
from jax.experimental import pallas as pl
from jax.experimental.pallas import tpu as pltpu

# ----- config (small synthetic shapes consistent with the module) -----------
POOL = 4            # cfg.MODEL.ROI_BOX_HEAD.POOLER_RESOLUTION
SAMPLING = 2        # cfg.MODEL.ROI_BOX_HEAD.POOLER_SAMPLING_RATIO
SCALE = 0.25        # cfg.MODEL.ROI_BOX_HEAD.POOLER_SCALES[0]
REPR = 32           # cfg.MODEL.ROI_BOX_HEAD.MLP_HEAD_DIM (feature_extractor.out_channels)
NUM_CLASSES = 5     # cfg.MODEL.ROI_BOX_HEAD.NUM_CLASSES

# fused lane-dense output layout (single 128-lane store per row tile)
OUT_W = 128
_X_OFF = 0                                  # lanes  0..31 : x (fc7 features)
_CLS_OFF = REPR                             # lanes 32..36 : cls_logits
_BOX_OFF = REPR + NUM_CLASSES               # lanes 37..56 : bbox_reg
_PROB_OFF = REPR + 5 * NUM_CLASSES          # lanes 57..61 : cls_prob (softmax)
_USED_W = REPR + 6 * NUM_CLASSES            # 62 used lanes, rest zero


def _round_up(x, m):
    return (x + m - 1) // m * m


# ----------------------------- Pallas kernel --------------------------------
def _box_head_kernel(pooled_ref, w6_ref, b6_ref, w7_ref, b7_ref,
                     wp_ref, bp_ref, out_ref):
    """fc6->ReLU->fc7->ReLU -> identity-augmented predictor matmul -> softmax lanes."""
    pooled = pooled_ref[...]                                            # [tn, d_in] bf16

    # fc6 -> ReLU  (bf16 MXU operands, f32 accumulate, f32 elementwise)
    h6 = jnp.dot(pooled, w6_ref[...],
                 preferred_element_type=jnp.float32) + b6_ref[...]
    h6 = jnp.maximum(h6, 0.0)
    # fc7 -> ReLU
    h7 = jnp.dot(h6.astype(jnp.bfloat16), w7_ref[...],
                 preferred_element_type=jnp.float32) + b7_ref[...]
    h7 = jnp.maximum(h7, 0.0)                                           # [tn, REPR] f32

    # identity-augmented predictor: one matmul emits the whole 128-lane slab
    #   [ h7(32) | cls_logits(5) | bbox_reg(20) | cls_logits(5) | 0(66) ]
    full = jnp.dot(h7.astype(jnp.bfloat16), wp_ref[...],
                   preferred_element_type=jnp.float32) + bp_ref[...]    # [tn, 128] f32

    # post_processor step 1: softmax over the class-logit lanes.
    # Lanes 57..61 already hold a duplicate of the logits, so the exp/normalize
    # lands the probabilities in place — no concat, no lane roll.
    lane = jax.lax.broadcasted_iota(jnp.int32, full.shape, 1)
    cls_mask = (lane >= _CLS_OFF) & (lane < _CLS_OFF + NUM_CLASSES)
    prob_mask = (lane >= _PROB_OFF) & (lane < _PROB_OFF + NUM_CLASSES)
    logit_mask = cls_mask | prob_mask

    masked = jnp.where(logit_mask, full, -jnp.inf)
    m = jnp.max(masked, axis=-1, keepdims=True)          # = row max over the 5 classes
    e = jnp.exp(masked - m)                               # zero outside logit lanes
    s = jnp.sum(e, axis=-1, keepdims=True) * 0.5          # duplicate lanes -> halve
    prob = e * pl.reciprocal(s, approx=True)              # EUP divide

    out_ref[...] = jnp.where(prob_mask, prob, full)


def prepare_params(raw):
    """One-time parameter preprocessing (hoisted off the per-call critical path)."""
    d_in = raw["w6"].shape[0]
    C = d_in // (POOL * POOL)

    # permute fc6 weights from torch flatten order (c, py, px) to ours (py, px, c)
    w6 = raw["w6"].reshape(C, POOL, POOL, REPR).transpose(1, 2, 0, 3).reshape(d_in, REPR)

    # identity-augmented fused predictor weight/bias: [REPR, 128]
    #   [ I_REPR | wc | wb | wc | 0 ]   (duplicated wc feeds the softmax lanes)
    eye = jnp.eye(REPR, dtype=jnp.float32)
    zpad = jnp.zeros((REPR, OUT_W - _USED_W), jnp.float32)
    wp = jnp.concatenate([eye, raw["wc"], raw["wb"], raw["wc"], zpad], axis=1)
    bpad = jnp.zeros((1, OUT_W - _USED_W), jnp.float32)
    bp = jnp.concatenate([jnp.zeros((1, REPR), jnp.float32),
                          raw["bc"], raw["bb"], raw["bc"], bpad], axis=1)

    return {
        "w6": w6.astype(jnp.bfloat16),
        "b6": raw["b6"],
        "w7": raw["w7"].astype(jnp.bfloat16),
        "b7": raw["b7"],
        "wp": wp.astype(jnp.bfloat16),
        "bp": bp,
    }


def box_head_mlp_predictor(pooled_flat, params):
    """Run the fused Pallas kernel over an N-tiled grid; weights stay VMEM-resident."""
    N, d_in = pooled_flat.shape
    pooled_bf = pooled_flat.astype(jnp.bfloat16)

    # N tiling: multiple of 8 sublanes; for small N split into >=2 grid steps so
    # dimension_semantics=("parallel",) can feed both v7x TensorCores; cap at 512
    # rows for the DMA-bound large-N regime.
    max_tile = 512
    if N <= max_tile:
        tile_n = _round_up(max(pl.cdiv(N, 2), 8), 8)
        n_pad = _round_up(N, tile_n)
    else:
        tile_n = max_tile
        n_pad = _round_up(N, tile_n)
    if n_pad != N:
        pooled_bf = jnp.pad(pooled_bf, ((0, n_pad - N), (0, 0)))

    # VMEM-resident constants: constant index_map + single buffering (they never change)
    def const_spec(a):
        return pl.BlockSpec(a.shape, lambda i: (0, 0), pipeline_mode=pl.Buffered(1))

    out = pl.pallas_call(
        _box_head_kernel,
        out_shape=jax.ShapeDtypeStruct((n_pad, OUT_W), jnp.float32),
        grid=(n_pad // tile_n,),
        in_specs=[
            pl.BlockSpec((tile_n, d_in), lambda i: (i, 0)),    # pooled rows (pipelined)
            const_spec(params["w6"]), const_spec(params["b6"]),
            const_spec(params["w7"]), const_spec(params["b7"]),
            const_spec(params["wp"]), const_spec(params["bp"]),
        ],
        out_specs=pl.BlockSpec((tile_n, OUT_W), lambda i: (i, 0)),
        compiler_params=pltpu.CompilerParams(
            dimension_semantics=("parallel",),
            vmem_limit_bytes=48 * 1024 * 1024),
    )(pooled_bf, params["w6"], params["b6"], params["w7"], params["b7"],
      params["wp"], params["bp"])

    # split the lane-dense buffer in the wrapper (padded rows sliced off)
    x = out[:N, _X_OFF:_X_OFF + REPR]
    cls_logits = out[:N, _CLS_OFF:_CLS_OFF + NUM_CLASSES]
    bbox_reg = out[:N, _BOX_OFF:_BOX_OFF + 4 * NUM_CLASSES]
    cls_prob = out[:N, _PROB_OFF:_PROB_OFF + NUM_CLASSES]
    return x, cls_logits, bbox_reg, cls_prob


# --------------- ROIAlign as a sparse 16-tap gather + weighted sum -----------
def build_bilinear_taps(rois, batch_idx, B, H, W):
    """Return (cols, wts), each [N, P*P, S*S*4], such that
       pooled[n, bin, c] == sum_t wts[n,bin,t] * feat_flat[cols[n,bin,t], c]
       with feat_flat = features NHWC reshaped to [B*H*W, C]
       (legacy non-aligned ROIAlign convention, samples clamped to the map)."""
    P, S = POOL, SAMPLING
    offs = (jnp.arange(S, dtype=jnp.float32) + 0.5) / S
    bins = jnp.arange(P, dtype=jnp.float32)

    def one(roi, b):
        x1, y1 = roi[0] * SCALE, roi[1] * SCALE
        x2, y2 = roi[2] * SCALE, roi[3] * SCALE
        roi_w = jnp.maximum(x2 - x1, 1.0)
        roi_h = jnp.maximum(y2 - y1, 1.0)
        ys = jnp.clip(y1 + (bins[:, None] + offs[None, :]) * (roi_h / P), 0.0, H - 1.0)  # [P,S]
        xs = jnp.clip(x1 + (bins[:, None] + offs[None, :]) * (roi_w / P), 0.0, W - 1.0)  # [P,S]
        y0 = jnp.floor(ys).astype(jnp.int32); y1i = jnp.minimum(y0 + 1, H - 1)
        x0 = jnp.floor(xs).astype(jnp.int32); x1i = jnp.minimum(x0 + 1, W - 1)
        ly = ys - y0.astype(jnp.float32); hy = 1.0 - ly
        lx = xs - x0.astype(jnp.float32); hx = 1.0 - lx

        wy = jnp.stack([hy, hy, ly, ly], axis=-1)                 # [P(py), S(sy), 4]
        wx = jnp.stack([hx, lx, hx, lx], axis=-1)                 # [P(px), S(sx), 4]
        yc = jnp.stack([y0, y0, y1i, y1i], axis=-1)               # [P(py), S(sy), 4]
        xc = jnp.stack([x0, x1i, x0, x1i], axis=-1)               # [P(px), S(sx), 4]

        # [py, sy, px, sx, corner]
        w = wy[:, :, None, None, :] * wx[None, None, :, :, :] / float(S * S)
        cols = (b * (H * W)
                + yc[:, :, None, None, :] * W
                + xc[None, None, :, :, :])
        # -> [py, px, sy, sx, corner] -> [P*P, S*S*4]
        w = jnp.transpose(w, (0, 2, 1, 3, 4)).reshape(P * P, S * S * 4)
        cols = jnp.transpose(cols, (0, 2, 1, 3, 4)).reshape(P * P, S * S * 4)
        return cols, w

    cols, wts = jax.vmap(one)(rois, batch_idx)      # [N, P*P, 16] int32 / f32
    return cols, wts


# ------------------------------ full forward ---------------------------------
def roi_box_head_forward(features, proposals, params):
    """Inference path of ROIBoxHead.forward (targets=None).

    features : [B, C, H, W]  single FPN level (NCHW)
    proposals: list of per-image [n_i, 4] xyxy boxes (image coordinates)
    params   : output of prepare_params()
    returns (x, (rois, cls_prob, bbox_reg), loss_dict={}, cls_logits)
    """
    B, C, H, W = features.shape
    rois = jnp.concatenate(proposals, axis=0)
    batch_idx = jnp.concatenate(
        [jnp.full((p.shape[0],), i, jnp.int32) for i, p in enumerate(proposals)])
    N = rois.shape[0]
    P, S = POOL, SAMPLING
    T = S * S * 4

    # ROIAlign pooler: sparse 16-tap gather + bf16 weighted sum (pooled lands in bf16)
    cols, wts = build_bilinear_taps(rois, batch_idx, B, H, W)          # [N, P*P, 16]
    feat_flat = jnp.transpose(features, (0, 2, 3, 1)).reshape(B * H * W, C)
    feat_bf = feat_flat.astype(jnp.bfloat16)
    gathered = jnp.take(feat_bf, cols.reshape(-1), axis=0).reshape(N, P * P, T, C)
    pooled = jnp.einsum('nbt,nbtc->nbc', wts.astype(jnp.bfloat16), gathered,
                        preferred_element_type=jnp.float32)            # [N, P*P, C] f32
    pooled_flat = pooled.reshape(N, P * P * C).astype(jnp.bfloat16)    # (py, px, c) order

    x, cls_logits, bbox_reg, cls_prob = box_head_mlp_predictor(pooled_flat, params)

    # TODO(synk): post_processor box decoding / clip-to-image / per-class NMS is
    #             data-dependent control flow with no clean Pallas equivalent;
    #             returning (rois, probs, deltas) instead.
    proposal_targets = (rois, cls_prob, bbox_reg)
    loss_dict = {}
    return x, proposal_targets, loss_dict, cls_logits


# --------------------------------- main --------------------------------------
if __name__ == "__main__":
    key = jax.random.PRNGKey(0)
    k_feat, k_b1, k_b2, k6, k7, kc, kb = jax.random.split(key, 7)

    B, C, H, W = 2, 4, 16, 16
    features = jax.random.normal(k_feat, (B, C, H, W), dtype=jnp.float32)

    # 8 proposals per image, image coordinates (image ~64x64 since SCALE=0.25)
    n_per_img = 8
    def make_boxes(k):
        xy = jax.random.uniform(k, (n_per_img, 2), minval=0.0, maxval=40.0)
        wh = jax.random.uniform(jax.random.fold_in(k, 1), (n_per_img, 2),
                                minval=8.0, maxval=24.0)
        return jnp.concatenate([xy, xy + wh], axis=-1)
    proposals = [make_boxes(k_b1), make_boxes(k_b2)]

    # deterministic parameter init (shapes from FPN2MLPFeatureExtractor / FPNPredictor,
    # weights stored transposed w.r.t. torch.nn.Linear: [in_features, out_features])
    d_in = C * POOL * POOL                     # 4*4*4 = 64
    raw_params = {
        "w6": 0.05 * jax.random.normal(k6, (d_in, REPR), jnp.float32),
        "b6": jnp.zeros((1, REPR), jnp.float32),
        "w7": 0.05 * jax.random.normal(k7, (REPR, REPR), jnp.float32),
        "b7": jnp.zeros((1, REPR), jnp.float32),
        "wc": 0.01 * jax.random.normal(kc, (REPR, NUM_CLASSES), jnp.float32),
        "bc": jnp.zeros((1, NUM_CLASSES), jnp.float32),
        "wb": 0.001 * jax.random.normal(kb, (REPR, NUM_CLASSES * 4), jnp.float32),
        "bb": jnp.zeros((1, NUM_CLASSES * 4), jnp.float32),
    }
    params = prepare_params(raw_params)        # one-time preprocessing (hoisted)

    x, proposal_targets, loss_dict, cls_logits = roi_box_head_forward(
        features, proposals, params)
    jax.block_until_ready((x, proposal_targets, cls_logits))

    N = 2 * n_per_img
    cls_prob = proposal_targets[1]
    assert x.shape == (N, REPR)
    assert cls_logits.shape == (N, NUM_CLASSES)
    assert cls_prob.shape == (N, NUM_CLASSES)
    assert proposal_targets[2].shape == (N, NUM_CLASSES * 4)
    assert bool(jnp.all(jnp.isfinite(x)))
    assert bool(jnp.all(jnp.abs(jnp.sum(cls_prob, axis=-1) - 1.0) < 1e-2))
    assert loss_dict == {}
    print("KERNEL_OK")
</pallas_src>

<mosaic_0001>
module attributes {stable_mosaic.version = 11 : i64} {
  func.func @_box_head_kernel(%arg0: i32, %arg1: memref<8x64xbf16, #tpu.memory_space<vmem>>, %arg2: memref<64x32xbf16, #tpu.memory_space<vmem>>, %arg3: memref<1x32xf32, #tpu.memory_space<vmem>>, %arg4: memref<32x32xbf16, #tpu.memory_space<vmem>>, %arg5: memref<1x32xf32, #tpu.memory_space<vmem>>, %arg6: memref<32x128xbf16, #tpu.memory_space<vmem>>, %arg7: memref<1x128xf32, #tpu.memory_space<vmem>>, %arg8: memref<8x128xf32, #tpu.memory_space<vmem>>) attributes {dimension_semantics = [#tpu.dimension_semantics<parallel>], iteration_bounds = array<i64: 2>, scalar_prefetch = 0 : i64, scratch_operands = 0 : i64, tpu.core_type = #tpu.core_type<tc>, window_params = [{transform_indices = @transform_0, window_bounds = array<i64: 8, 64>}, {pipeline_mode = #tpu.pipeline_mode<synchronous>, transform_indices = @transform_1, window_bounds = array<i64: 64, 32>}, {pipeline_mode = #tpu.pipeline_mode<synchronous>, transform_indices = @transform_2, window_bounds = array<i64: 1, 32>}, {pipeline_mode = #tpu.pipeline_mode<synchronous>, transform_indices = @transform_3, window_bounds = array<i64: 32, 32>}, {pipeline_mode = #tpu.pipeline_mode<synchronous>, transform_indices = @transform_4, window_bounds = array<i64: 1, 32>}, {pipeline_mode = #tpu.pipeline_mode<synchronous>, transform_indices = @transform_5, window_bounds = array<i64: 32, 128>}, {pipeline_mode = #tpu.pipeline_mode<synchronous>, transform_indices = @transform_6, window_bounds = array<i64: 1, 128>}, {transform_indices = @transform_7, window_bounds = array<i64: 8, 128>}]} {
    %c0 = arith.constant 0 : index
    %c0_0 = arith.constant 0 : index
    %0 = vector.load %arg1[%c0, %c0_0] : memref<8x64xbf16, #tpu.memory_space<vmem>>, vector<8x64xbf16>
    %c0_1 = arith.constant 0 : index
    %c0_2 = arith.constant 0 : index
    %1 = vector.load %arg2[%c0_1, %c0_2] : memref<64x32xbf16, #tpu.memory_space<vmem>>, vector<64x32xbf16>
    %cst = arith.constant dense<0.000000e+00> : vector<8x32xf32>
    %2 = tpu.matmul %0, %1, %cst {dimension_numbers = #tpu.dot_dimension_numbers<[1], [0], [0], [1], [0, 0, 1, 1], [], []>} : vector<8x64xbf16>, vector<64x32xbf16>, vector<8x32xf32> -> vector<8x32xf32>
    %c0_3 = arith.constant 0 : index
    %c0_4 = arith.constant 0 : index
    %3 = vector.load %arg3[%c0_3, %c0_4] : memref<1x32xf32, #tpu.memory_space<vmem>>, vector<1x32xf32>
    %4 = vector.broadcast %3 : vector<1x32xf32> to vector<8x32xf32>
    %5 = arith.addf %2, %4 : vector<8x32xf32>
    %cst_5 = arith.constant 0.000000e+00 : f32
    %6 = vector.broadcast %cst_5 : f32 to vector<8x32xf32>
    %7 = arith.maximumf %5, %6 : vector<8x32xf32>
    %8 = arith.truncf %7 : vector<8x32xf32> to vector<8x32xbf16>
    %c0_6 = arith.constant 0 : index
    %c0_7 = arith.constant 0 : index
    %9 = vector.load %arg4[%c0_6, %c0_7] : memref<32x32xbf16, #tpu.memory_space<vmem>>, vector<32x32xbf16>
    %cst_8 = arith.constant dense<0.000000e+00> : vector<8x32xf32>
    %10 = tpu.matmul %8, %9, %cst_8 {dimension_numbers = #tpu.dot_dimension_numbers<[1], [0], [0], [1], [0, 0, 1, 1], [], []>} : vector<8x32xbf16>, vector<32x32xbf16>, vector<8x32xf32> -> vector<8x32xf32>
    %c0_9 = arith.constant 0 : index
    %c0_10 = arith.constant 0 : index
    %11 = vector.load %arg5[%c0_9, %c0_10] : memref<1x32xf32, #tpu.memory_space<vmem>>, vector<1x32xf32>
    %12 = vector.broadcast %11 : vector<1x32xf32> to vector<8x32xf32>
    %13 = arith.addf %10, %12 : vector<8x32xf32>
    %cst_11 = arith.constant 0.000000e+00 : f32
    %14 = vector.broadcast %cst_11 : f32 to vector<8x32xf32>
    %15 = arith.maximumf %13, %14 : vector<8x32xf32>
    %16 = arith.truncf %15 : vector<8x32xf32> to vector<8x32xbf16>
    %c0_12 = arith.constant 0 : index
    %c0_13 = arith.constant 0 : index
    %17 = vector.load %arg6[%c0_12, %c0_13] : memref<32x128xbf16, #tpu.memory_space<vmem>>, vector<32x128xbf16>
    %cst_14 = arith.constant dense<0.000000e+00> : vector<8x128xf32>
    %18 = tpu.matmul %16, %17, %cst_14 {dimension_numbers = #tpu.dot_dimension_numbers<[1], [0], [0], [1], [0, 0, 1, 1], [], []>} : vector<8x32xbf16>, vector<32x128xbf16>, vector<8x128xf32> -> vector<8x128xf32>
    %c0_15 = arith.constant 0 : index
    %c0_16 = arith.constant 0 : index
    %19 = vector.load %arg7[%c0_15, %c0_16] : memref<1x128xf32, #tpu.memory_space<vmem>>, vector<1x128xf32>
    %20 = vector.broadcast %19 : vector<1x128xf32> to vector<8x128xf32>
    %21 = arith.addf %18, %20 : vector<8x128xf32>
    %22 = tpu.iota {dimensions = array<i32: 1>} : vector<8x128xi32>
    %c32_i32 = arith.constant 32 : i32
    %23 = vector.broadcast %c32_i32 : i32 to vector<8x128xi32>
    %24 = arith.cmpi sge, %22, %23 : vector<8x128xi32>
    %c37_i32 = arith.constant 37 : i32
    %25 = vector.broadcast %c37_i32 : i32 to vector<8x128xi32>
    %26 = arith.cmpi slt, %22, %25 : vector<8x128xi32>
    %27 = arith.andi %24, %26 : vector<8x128xi1>
    %c57_i32 = arith.constant 57 : i32
    %28 = vector.broadcast %c57_i32 : i32 to vector<8x128xi32>
    %29 = arith.cmpi sge, %22, %28 : vector<8x128xi32>
    %c62_i32 = arith.constant 62 : i32
    %30 = vector.broadcast %c62_i32 : i32 to vector<8x128xi32>
    %31 = arith.cmpi slt, %22, %30 : vector<8x128xi32>
    %32 = arith.andi %29, %31 : vector<8x128xi1>
    %33 = arith.ori %27, %32 : vector<8x128xi1>
    %cst_17 = arith.constant 0xFF800000 : f32
    %34 = vector.broadcast %cst_17 : f32 to vector<8x128xf32>
    %35 = arith.select %33, %21, %34 : vector<8x128xi1>, vector<8x128xf32>
    %cst_18 = arith.constant dense<0xFF800000> : vector<8xf32>
    %36 = vector.multi_reduction <maximumf>, %35, %cst_18 [1] : vector<8x128xf32> to vector<8xf32>
    %37 = vector.shape_cast %36 : vector<8xf32> to vector<8x1xf32>
    %38 = vector.broadcast %37 : vector<8x1xf32> to vector<8x128xf32>
    %39 = arith.subf %35, %38 : vector<8x128xf32>
    %40 = math.exp %39 : vector<8x128xf32>
    %cst_19 = arith.constant dense<0.000000e+00> : vector<8xf32>
    %41 = vector.multi_reduction <add>, %40, %cst_19 [1] : vector<8x128xf32> to vector<8xf32>
    %42 = vector.shape_cast %41 : vector<8xf32> to vector<8x1xf32>
    %cst_20 = arith.constant 5.000000e-01 : f32
    %43 = vector.broadcast %cst_20 : f32 to vector<8x1xf32>
    %44 = arith.mulf %42, %43 : vector<8x1xf32>
    %45 = tpu.reciprocal %44 {approx = true} : vector<8x1xf32> -> vector<8x1xf32>
    %46 = vector.broadcast %45 : vector<8x1xf32> to vector<8x128xf32>
    %47 = arith.mulf %40, %46 : vector<8x128xf32>
    %48 = arith.select %32, %47, %21 : vector<8x128xi1>, vector<8x128xf32>
    %c0_21 = arith.constant 0 : index
    %c0_22 = arith.constant 0 : index
    %49 = vector.load %arg8[%c0_21, %c0_22] : memref<8x128xf32, #tpu.memory_space<vmem>>, vector<8x128xf32>
    tpu.vector_store %arg8[%c0_21, %c0_22], %48 {strides = array<i32>} : memref<8x128xf32, #tpu.memory_space<vmem>>, vector<8x128xf32>,
    return
  }
  func.func @transform_0(%arg0: i32) -> (i32, i32) {
    %c0_i32 = arith.constant 0 : i32
    %c0_i32_0 = arith.constant 0 : i32
    return %arg0, %c0_i32 : i32, i32
  }
  func.func @transform_1(%arg0: i32) -> (i32, i32) {
    %c0_i32 = arith.constant 0 : i32
    %c0_i32_0 = arith.constant 0 : i32
    %c0_i32_1 = arith.constant 0 : i32
    return %c0_i32, %c0_i32_0 : i32, i32
  }
  func.func @transform_2(%arg0: i32) -> (i32, i32) {
    %c0_i32 = arith.constant 0 : i32
    %c0_i32_0 = arith.constant 0 : i32
    %c0_i32_1 = arith.constant 0 : i32
    return %c0_i32, %c0_i32_0 : i32, i32
  }
  func.func @transform_3(%arg0: i32) -> (i32, i32) {
    %c0_i32 = arith.constant 0 : i32
    %c0_i32_0 = arith.constant 0 : i32
    %c0_i32_1 = arith.constant 0 : i32
    return %c0_i32, %c0_i32_0 : i32, i32
  }
  func.func @transform_4(%arg0: i32) -> (i32, i32) {
    %c0_i32 = arith.constant 0 : i32
    %c0_i32_0 = arith.constant 0 : i32
    %c0_i32_1 = arith.constant 0 : i32
    return %c0_i32, %c0_i32_0 : i32, i32
  }
  func.func @transform_5(%arg0: i32) -> (i32, i32) {
    %c0_i32 = arith.constant 0 : i32
    %c0_i32_0 = arith.constant 0 : i32
    %c0_i32_1 = arith.constant 0 : i32
    return %c0_i32, %c0_i32_0 : i32, i32
  }
  func.func @transform_6(%arg0: i32) -> (i32, i32) {
    %c0_i32 = arith.constant 0 : i32
    %c0_i32_0 = arith.constant 0 : i32
    %c0_i32_1 = arith.constant 0 : i32
    return %c0_i32, %c0_i32_0 : i32, i32
  }
  func.func @transform_7(%arg0: i32) -> (i32, i32) {
    %c0_i32 = arith.constant 0 : i32
    %c0_i32_0 = arith.constant 0 : i32
    return %arg0, %c0_i32 : i32, i32
  }
}

</mosaic_0001>

<llo_original>
// kernel: tpu_custom_call.1
$region0: #{tpu_custom_call.1}
  #allocation0 [shape = 'u32[]', space=smem, size = 0x4, offset = 0x4, fixed_abs, tag = 'smem constant byte address 0x4 - core index']
  #allocation1 [shape = 'u32[72,128]{1,0:T(1,128)}', space=vmem, size = 0x9000, scoped, tag = 'internal scratch']
  %s0 = inlined_call_operand.vmem [shape: bf16[16,64], index: 0, kind: input, shape index: {}]
  %s1 = inlined_call_operand.vmem [shape: bf16[64,32], index: 1, kind: input, shape index: {}]
  %s2 = inlined_call_operand.vmem [shape: f32[1,32], index: 2, kind: input, shape index: {}]
  %s3 = inlined_call_operand.vmem [shape: bf16[32,32], index: 3, kind: input, shape index: {}]
  %s4 = inlined_call_operand.vmem [shape: f32[1,32], index: 4, kind: input, shape index: {}]
  %s5 = inlined_call_operand.vmem [shape: bf16[32,128], index: 5, kind: input, shape index: {}]
  %s6 = inlined_call_operand.vmem [shape: f32[1,128], index: 6, kind: input, shape index: {}]
  %s7 = inlined_call_operand.hbm [shape: f32[16,128], index: 7, kind: output, shape index: {}]
  %s8 = sld [smem:[#allocation0]]
  $region61: #{tpu_custom_call.1} parent=0
    _
  %s10 = ssub.s32 1, %s8
  %s11 = scalar_select 0, %s10, %s8
  $region1: #{tpu_custom_call.1} parent=0
    #allocation2 [shape = 'u8[8192]{0}', space=vmem, size = 0x2000, scoped, tag = 'output window, operand 0']
    #allocation3 [shape = 's32[2]{0}', space=sflag, size = 0x8, scoped, tag = 'scoped memory for tpu_custom_call.1']
    %12 = vsyncpa [#allocation3], 0
    %s13 = scalar_lea.sflag [#allocation3], 1
    %14 = vsyncpa %s13, 0
    loop: start=0, step=1, limit=4
    $region2: #{tpu_custom_call.1} parent=1 // loop_pre_header
      _
    $region3: #{tpu_custom_call.1} parent=1 // loop_header
      %s16 = sphi 0, %s20
      %p17 = scmp.ge.s32.totalorder %s16, 4
      %s26 = sphi 0, %s28
      %s29 = sphi 0, %s26
      %s30 = sphi 0, %s29
      %s46 = sphi 0, %s30
      %s50 = sphi 0, %s50
      %s52 = sphi 0, %s50
      %s53 = sphi 0, %s52
      %s67 = sphi 0, %s53
      %s71 = sphi 0, %s71
      %s73 = sphi 0, %s71
      %s74 = sphi 0, %s73
      %s88 = sphi 0, %s74
      %s92 = sphi 0, %s92
      %s94 = sphi 0, %s92
      %s95 = sphi 0, %s94
      %s109 = sphi 0, %s95
      %s113 = sphi 0, %s113
      %s115 = sphi 0, %s113
      %s116 = sphi 0, %s115
      %s130 = sphi 0, %s116
      %s134 = sphi 0, %s134
      %s136 = sphi 0, %s134
      %s137 = sphi 0, %s136
      %s151 = sphi 0, %s137
      %s155 = sphi 0, %s155
      %s157 = sphi 0, %s155
      %s158 = sphi 0, %s157
      %s172 = sphi 0, %s158
      %s178 = sphi 0, %s180
      %s181 = sphi 0, %s178
      %s182 = sphi 0, %s181
      %s198 = sphi 0, %s182
    $region4: #{tpu_custom_call.1} parent=1 // loop_header_branch
      %19 = sbr.rel (%p17) target = $region8
    $region5: #{tpu_custom_call.1} parent=1 // loop_body
      %s21 = ssub.s32 %s16, 1
      %s22 = ssub.s32 %s16, 2
      %s23 = sadd.s32 %s16, 1
      %s24 = ssub.s32 %s16, %s23
      %p25 = scmp.eq.s32.totalorder %s24, 0
      %s27 = sadd.s32 %s26, 1
      %s28 = scalar_select %p25, %s26, %s27
      %p31 = pneg %p25
      %p32 = scmp.eq.s32.totalorder %s16, 1
      %p33 = por %p31, %p32
      %p34 = scmp.ne.s32.totalorder %s26, %s29
      %p35 = scmp.eq.s32.totalorder %s16, 0
      %p36 = por %p34, %p35
      %p37 = scmp.ne.s32.totalorder %s26, %s29
      %p38 = scmp.eq.s32.totalorder %s21, 1
      %p39 = por %p37, %p38
      %p40 = scmp.ne.s32.totalorder %s29, %s30
      %p41 = scmp.eq.s32.totalorder %s21, 0
      %p42 = por %p40, %p41
      %p43 = scmp.ne.s32.totalorder %s29, %s30
      %p44 = scmp.eq.s32.totalorder %s22, 1
      %p45 = por %p43, %p44
      %p47 = scmp.ne.s32.totalorder %s30, %s46
      %p48 = scmp.eq.s32.totalorder %s22, 0
      %p49 = por %p47, %p48
      %s51 = sadd.s32 %s50, 1
      %p54 = scmp.eq.s32.totalorder %s16, 1
      %p55 = scmp.ne.s32.totalorder %s50, %s52
      %p56 = scmp.eq.s32.totalorder %s16, 0
      %p57 = por %p55, %p56
      %p58 = scmp.ne.s32.totalorder %s50, %s52
      %p59 = scmp.eq.s32.totalorder %s21, 1
      %p60 = por %p58, %p59
      %p61 = scmp.ne.s32.totalorder %s52, %s53
      %p62 = scmp.eq.s32.totalorder %s21, 0
      %p63 = por %p61, %p62
      %p64 = scmp.ne.s32.totalorder %s52, %s53
      %p65 = scmp.eq.s32.totalorder %s22, 1
      %p66 = por %p64, %p65
      %p68 = scmp.ne.s32.totalorder %s53, %s67
      %p69 = scmp.eq.s32.totalorder %s22, 0
      %p70 = por %p68, %p69
      %s72 = sadd.s32 %s71, 1
      %p75 = scmp.eq.s32.totalorder %s16, 1
      %p76 = scmp.ne.s32.totalorder %s71, %s73
      %p77 = scmp.eq.s32.totalorder %s16, 0
      %p78 = por %p76, %p77
      %p79 = scmp.ne.s32.totalorder %s71, %s73
      %p80 = scmp.eq.s32.totalorder %s21, 1
      %p81 = por %p79, %p80
      %p82 = scmp.ne.s32.totalorder %s73, %s74
      %p83 = scmp.eq.s32.totalorder %s21, 0
      %p84 = por %p82, %p83
      %p85 = scmp.ne.s32.totalorder %s73, %s74
      %p86 = scmp.eq.s32.totalorder %s22, 1
      %p87 = por %p85, %p86
      %p89 = scmp.ne.s32.totalorder %s74, %s88
      %p90 = scmp.eq.s32.totalorder %s22, 0
      %p91 = por %p89, %p90
      %s93 = sadd.s32 %s92, 1
      %p96 = scmp.eq.s32.totalorder %s16, 1
      %p97 = scmp.ne.s32.totalorder %s92, %s94
      %p98 = scmp.eq.s32.totalorder %s16, 0
      %p99 = por %p97, %p98
      %p100 = scmp.ne.s32.totalorder %s92, %s94
      %p101 = scmp.eq.s32.totalorder %s21, 1
      %p102 = por %p100, %p101
      %p103 = scmp.ne.s32.totalorder %s94, %s95
      %p104 = scmp.eq.s32.totalorder %s21, 0
      %p105 = por %p103, %p104
      %p106 = scmp.ne.s32.totalorder %s94, %s95
      %p107 = scmp.eq.s32.totalorder %s22, 1
      %p108 = por %p106, %p107
      %p110 = scmp.ne.s32.totalorder %s95, %s109
      %p111 = scmp.eq.s32.totalorder %s22, 0
      %p112 = por %p110, %p111
      %s114 = sadd.s32 %s113, 1
      %p117 = scmp.eq.s32.totalorder %s16, 1
      %p118 = scmp.ne.s32.totalorder %s113, %s115
      %p119 = scmp.eq.s32.totalorder %s16, 0
      %p120 = por %p118, %p119
      %p121 = scmp.ne.s32.totalorder %s113, %s115
      %p122 = scmp.eq.s32.totalorder %s21, 1
      %p123 = por %p121, %p122
      %p124 = scmp.ne.s32.totalorder %s115, %s116
      %p125 = scmp.eq.s32.totalorder %s21, 0
      %p126 = por %p124, %p125
      %p127 = scmp.ne.s32.totalorder %s115, %s116
      %p128 = scmp.eq.s32.totalorder %s22, 1
      %p129 = por %p127, %p128
      %p131 = scmp.ne.s32.totalorder %s116, %s130
      %p132 = scmp.eq.s32.totalorder %s22, 0
      %p133 = por %p131, %p132
      %s135 = sadd.s32 %s134, 1
      %p138 = scmp.eq.s32.totalorder %s16, 1
      %p139 = scmp.ne.s32.totalorder %s134, %s136
      %p140 = scmp.eq.s32.totalorder %s16, 0
      %p141 = por %p139, %p140
      %p142 = scmp.ne.s32.totalorder %s134, %s136
      %p143 = scmp.eq.s32.totalorder %s21, 1
      %p144 = por %p142, %p143
      %p145 = scmp.ne.s32.totalorder %s136, %s137
      %p146 = scmp.eq.s32.totalorder %s21, 0
      %p147 = por %p145, %p146
      %p148 = scmp.ne.s32.totalorder %s136, %s137
      %p149 = scmp.eq.s32.totalorder %s22, 1
      %p150 = por %p148, %p149
      %p152 = scmp.ne.s32.totalorder %s137, %s151
      %p153 = scmp.eq.s32.totalorder %s22, 0
      %p154 = por %p152, %p153
      %s156 = sadd.s32 %s155, 1
      %p159 = scmp.eq.s32.totalorder %s16, 1
      %p160 = scmp.ne.s32.totalorder %s155, %s157
      %p161 = scmp.eq.s32.totalorder %s16, 0
      %p162 = por %p160, %p161
      %p163 = scmp.ne.s32.totalorder %s155, %s157
      %p164 = scmp.eq.s32.totalorder %s21, 1
      %p165 = por %p163, %p164
      %p166 = scmp.ne.s32.totalorder %s157, %s158
      %p167 = scmp.eq.s32.totalorder %s21, 0
      %p168 = por %p166, %p167
      %p169 = scmp.ne.s32.totalorder %s157, %s158
      %p170 = scmp.eq.s32.totalorder %s22, 1
      %p171 = por %p169, %p170
      %p173 = scmp.ne.s32.totalorder %s158, %s172
      %p174 = scmp.eq.s32.totalorder %s22, 0
      %p175 = por %p173, %p174
      %s176 = ssub.s32 %s16, %s23
      %p177 = scmp.eq.s32.totalorder %s176, 0
      %s179 = sadd.s32 %s178, 1
      %s180 = scalar_select %p177, %s178, %s179
      %p183 = pneg %p177
      %p184 = scmp.eq.s32.totalorder %s16, 1
      %p185 = por %p183, %p184
      %p186 = scmp.ne.s32.totalorder %s178, %s181
      %p187 = scmp.eq.s32.totalorder %s16, 0
      %p188 = por %p186, %p187
      %p189 = scmp.ne.s32.totalorder %s178, %s181
      %p190 = scmp.eq.s32.totalorder %s21, 1
      %p191 = por %p189, %p190
      %p192 = scmp.ne.s32.totalorder %s181, %s182
      %p193 = scmp.eq.s32.totalorder %s21, 0
      %p194 = por %p192, %p193
      %p195 = scmp.ne.s32.totalorder %s181, %s182
      %p196 = scmp.eq.s32.totalorder %s22, 1
      %p197 = por %p195, %p196
      %p199 = scmp.ne.s32.totalorder %s182, %s198
      %p200 = scmp.eq.s32.totalorder %s22, 0
      %p201 = por %p199, %p200
      %p202 = scmp.le.s32.totalorder 1, %s16
      %p203 = scmp.lt.s32.totalorder %s16, 3
      %p204 = pnand %p202, %p203
      %p205 = pneg %p204
      // Predicated region
      $region9: #{tpu_custom_call.1} parent=5 // pred_check
        _
      $region10: #{tpu_custom_call.1} parent=5 // pred_check_branch
        %207 = sbr.rel (%p204) target = $region12
      $region11: #{tpu_custom_call.1} parent=5 // pred_region
        %s208 = ssub.s32 %s16, 1
        // Predicated region
        $region13: #{tpu_custom_call.1} parent=11 // pred_check
          %p209 = pneg %p63
        $region14: #{tpu_custom_call.1} parent=11 // pred_check_branch
          %211 = sbr.rel (%p209) target = $region16
        $region15: #{tpu_custom_call.1} parent=11 // pred_region
          _
        $region16: #{tpu_custom_call.1} parent=11 // pred_fallthru
          _
        // Predicated region
        $region17: #{tpu_custom_call.1} parent=11 // pred_check
          %p212 = pneg %p84
        $region18: #{tpu_custom_call.1} parent=11 // pred_check_branch
          %214 = sbr.rel (%p212) target = $region20
        $region19: #{tpu_custom_call.1} parent=11 // pred_region
          _
        $region20: #{tpu_custom_call.1} parent=11 // pred_fallthru
          _
        // Predicated region
        $region21: #{tpu_custom_call.1} parent=11 // pred_check
          %p215 = pneg %p105
        $region22: #{tpu_custom_call.1} parent=11 // pred_check_branch
          %217 = sbr.rel (%p215) target = $region24
        $region23: #{tpu_custom_call.1} parent=11 // pred_region
          _
        $region24: #{tpu_custom_call.1} parent=11 // pred_fallthru
          _
        // Predicated region
        $region25: #{tpu_custom_call.1} parent=11 // pred_check
          %p218 = pneg %p126
        $region26: #{tpu_custom_call.1} parent=11 // pred_check_branch
          %220 = sbr.rel (%p218) target = $region28
        $region27: #{tpu_custom_call.1} parent=11 // pred_region
          _
        $region28: #{tpu_custom_call.1} parent=11 // pred_fallthru
          _
        // Predicated region
        $region29: #{tpu_custom_call.1} parent=11 // pred_check
          %p221 = pneg %p147
        $region30: #{tpu_custom_call.1} parent=11 // pred_check_branch
          %223 = sbr.rel (%p221) target = $region32
        $region31: #{tpu_custom_call.1} parent=11 // pred_region
          _
        $region32: #{tpu_custom_call.1} parent=11 // pred_fallthru
          _
        // Predicated region
        $region33: #{tpu_custom_call.1} parent=11 // pred_check
          %p224 = pneg %p168
        $region34: #{tpu_custom_call.1} parent=11 // pred_check_branch
          %226 = sbr.rel (%p224) target = $region36
        $region35: #{tpu_custom_call.1} parent=11 // pred_region
          _
        $region36: #{tpu_custom_call.1} parent=11 // pred_fallthru
          _
      $region12: #{tpu_custom_call.1} parent=5 // pred_fallthru
        _
      %p227 = scmp.lt.s32.totalorder %s16, 2
      // Predicated region
      $region37: #{tpu_custom_call.1} parent=5 // pred_check
        %p228 = pneg %p227
      $region38: #{tpu_custom_call.1} parent=5 // pred_check_branch
        %230 = sbr.rel (%p228) target = $region40
      $region39: #{tpu_custom_call.1} parent=5 // pred_region
        // Predicated region
        $region41: #{tpu_custom_call.1} parent=39 // pred_check
          %p231 = pneg %p36
        $region42: #{tpu_custom_call.1} parent=39 // pred_check_branch
          %233 = sbr.rel (%p231) target = $region44
        $region43: #{tpu_custom_call.1} parent=39 // pred_region
          %p234 = scmp.lt.s32.totalorder %s16, 1
          %s235 = scalar_select %p234, %s16, 1
          %s236 = smul.addr %s235, 4
          %s237 = scalar_lea.vmem %s0, %s236
        $region44: #{tpu_custom_call.1} parent=39 // pred_fallthru
          _
      $region40: #{tpu_custom_call.1} parent=5 // pred_fallthru
        _
      %p238 = scmp.le.s32.totalorder 1, %s16
      %p239 = scmp.lt.s32.totalorder %s16, 3
      %p240 = pnand %p238, %p239
      %p241 = pneg %p240
      // Predicated region
      $region45: #{tpu_custom_call.1} parent=5 // pred_check
        _
      $region46: #{tpu_custom_call.1} parent=5 // pred_check_branch
        %243 = sbr.rel (%p240) target = $region48
      $region47: #{tpu_custom_call.1} parent=5 // pred_region
        %s244 = ssub.s32 %s16, 1
        %p245 = scmp.lt.s32.totalorder %s21, 1
        %s246 = scalar_select %p245, %s21, 1
        %s247 = smul.addr %s246, 4
        %s248 = scalar_lea.vmem %s0, %s247
        %p249 = pneg %p42
        %p250 = pneg %p39
        %p251 = pneg %p63
        %p252 = pneg %p60
        %p253 = pneg %p84
        %p254 = pneg %p81
        %p255 = pneg %p105
        %p256 = pneg %p102
        %p257 = pneg %p126
        %p258 = pneg %p123
        %p259 = pneg %p147
        %p260 = pneg %p144
        %p261 = pneg %p168
        %p262 = pneg %p165
        %p263 = pneg %p194
        %p264 = pneg %p191
        %s265 = sand.u32 %s181, 1
        %s266 = scalar_lea.sflag [#allocation3], %s265
        %s267 = sand.u32 %s181, 1
        %s268 = smul.addr %s267, 8
        %s269 = scalar_lea.vmem [#allocation2], %s268
        %p270 = scmp.lt.s32.totalorder %s21, 1
        %s271 = scalar_select %p270, %s21, 1
        %s272 = smul.addr %s271, 4
        %s273 = scalar_lea.vmem %s0, %s272
        %v275 = vld [vmem:[%s273] sm:$0xf]
        %v276 = vld [vmem:[%s1] sm:$0xf]
        %v277 = vld [vmem:[%s1 + $0x4] sm:$0xf]
        %v278 = vld [vmem:[%s1 + $0x8] sm:$0xf]
        %v279 = vld [vmem:[%s1 + $0xc] sm:$0xf]
        %v280 = vld [vmem:[%s1 + $0x10] sm:$0xf]
        %v281 = vld [vmem:[%s1 + $0x14] sm:$0xf]
        %v282 = vld [vmem:[%s1 + $0x18] sm:$0xf]
        %v283 = vld [vmem:[%s1 + $0x1c] sm:$0xf]
        %v284 = vld [vmem:[%s2] sm:$0x1]
        %v286 = vperm.slane %v284, 0
        %v296 = vunpack.c.l.b16 %v276
        %v297 = vunpack.c.l.b16 %v277
        %v298 = vunpack.c.l.b16 %v278
        %v299 = vunpack.c.l.b16 %v279
        %v300 = vunpack.c.l.b16 %v280
        %v301 = vunpack.c.l.b16 %v281
        %v302 = vunpack.c.l.b16 %v282
        %v303 = vunpack.c.l.b16 %v283
        %v304 = vpack.c.b16 %v297, %v296
        %v305 = vpack.c.b16 %v299, %v298
        %v306 = vpack.c.b16 %v301, %v300
        %v307 = vpack.c.b16 %v303, %v302
        %vm312 = vcmask 523264
        %v314 = vsel %vm312, %v275, 0
        %316 = vmatpush.bf16.msra.mxu0 0
        %317 = vmatpush.bf16.msra.mxu0 0
        %318 = vmatpush.bf16.msra.mxu0 0
        %319 = vmatpush.bf16.msra.mxu0 0
        %320 = vmatpush.bf16.msra.mxu0 %v307
        %321 = vmatpush.bf16.msra.mxu0 %v306
        %322 = vmatpush.bf16.msra.mxu0 %v305
        %323 = vmatpush.bf16.msra.mxu0 %v304
        %324 = vmatmul.bf16.gmra.mxu0 %v314
        %v325 = vpop.f32.mrf.mxu0
        %v326 = vadd.f32 %v286, %v325
        %v327 = vpop.f32.mrf.mxu0
        %328 = vdwg.mxu0
        %v329 = vmax.f32 %v326, 0.0
        %v330 = vpack.c.bf16 %v329, %v329
        %v331 = vld [vmem:[%s3] sm:$0xf]
        %v332 = vld [vmem:[%s3 + $0x4] sm:$0xf]
        %v333 = vld [vmem:[%s3 + $0x8] sm:$0xf]
        %v334 = vld [vmem:[%s3 + $0xc] sm:$0xf]
        %v335 = vld [vmem:[%s4] sm:$0x1]
        %v337 = vperm.slane %v335, 0
        %v343 = vunpack.c.l.b16 %v331
        %v344 = vunpack.c.l.b16 %v332
        %v345 = vunpack.c.l.b16 %v333
        %v346 = vunpack.c.l.b16 %v334
        %v347 = vpack.c.b16 %v344, %v343
        %v348 = vpack.c.b16 %v346, %v345
        %vm351 = vcmask 261120
        %v353 = vsel %vm351, %v330, 0
        %355 = vmatpush.bf16.msra.mxu0 0
        %356 = vmatpush.bf16.msra.mxu0 0
        %357 = vmatpush.bf16.msra.mxu0 0
        %358 = vmatpush.bf16.msra.mxu0 0
        %359 = vmatpush.bf16.msra.mxu0 0
        %360 = vmatpush.bf16.msra.mxu0 0
        %361 = vmatpush.bf16.msra.mxu0 %v348
        %362 = vmatpush.bf16.msra.mxu0 %v347
        %363 = vmatmul.bf16.gmra.mxu0 %v353
        %v364 = vpop.f32.mrf.mxu0
        %v365 = vadd.f32 %v337, %v364
        %v366 = vpop.f32.mrf.mxu0
        %367 = vdwg.mxu0
        %v368 = vmax.f32 %v365, 0.0
        %v369 = vpack.c.bf16 %v368, %v368
        %v370 = vld [vmem:[%s5] sm:$0xf]
        %v371 = vld [vmem:[%s5 + $0x4] sm:$0xf]
        %v372 = vld [vmem:[%s5 + $0x8] sm:$0xf]
        %v373 = vld [vmem:[%s5 + $0xc] sm:$0xf]
        %v374 = vld [vmem:[%s6] sm:$0x1]
        %v376 = vperm.slane %v374, 0
        %v382 = vunpack.c.l.b16 %v370
        %v383 = vunpack.c.l.b16 %v371
        %v384 = vunpack.c.l.b16 %v372
        %v385 = vunpack.c.l.b16 %v373
        %v386 = vpack.c.b16 %v383, %v382
        %v387 = vpack.c.b16 %v385, %v384
        %v391 = vsel %vm351, %v369, 0
        %393 = vmatpush.bf16.msra.mxu0 0
        %394 = vmatpush.bf16.msra.mxu0 0
        %395 = vmatpush.bf16.msra.mxu0 0
        %396 = vmatpush.bf16.msra.mxu0 0
        %397 = vmatpush.bf16.msra.mxu0 0
        %398 = vmatpush.bf16.msra.mxu0 0
        %399 = vmatpush.bf16.msra.mxu0 %v387
        %400 = vmatpush.bf16.msra.mxu0 %v386
        %401 = vmatmul.bf16.gmra.mxu0 %v391
        %v402 = vpop.f32.mrf.mxu0
        %v403 = vadd.f32 %v376, %v402
        %v404 = vpop.f32.mrf.mxu0
        %405 = vdwg.mxu0
        %v406 = vlaneseq
        %v407 = vand.u32 %v406, 127
        %vm408 = vcmp.ge.s32.totalorder %v407, 32
        %vm409 = vcmp.lt.s32.totalorder %v407, 37
        %vm410 = vmand %vm408, %vm409
        %vm411 = vcmp.ge.s32.totalorder %v407, 57
        %vm412 = vcmp.lt.s32.totalorder %v407, 62
        %vm413 = vmand %vm411, %vm412
        %vm414 = vmor %vm410, %vm413
        %v415 = vsel %vm414, %v403, -inf
        %416 = vmax.xlane.f32.xlu0 %v415
        %v417 = vpop.xlane.xlu0 %416
        %v418 = vsub.f32 %v415, %v417
        %v419 = vmul.f32 %v418, 1.442695
        %v420 = vpow.pop %v419
        %421 = vadd.xlane.f32.xlu0 %v420
        %v422 = vpop.xlane.xlu0 %421
        %v423 = vmul.f32 %v422, 0.5
        %v424 = vrcp.pop %v423
        %v425 = vmul.f32 %v420, %v424
        %v426 = vsel %vm413, %v425, %v403
        %427 = vst [vmem:[%s269] sm:$0xff] %v426
        %s428 = sand.u32 %s181, 1
        %s429 = scalar_lea.sflag [#allocation3], %s428
        %s430 = sand.u32 %s181, 1
        %s431 = smul.addr %s430, 8
        %s432 = scalar_lea.vmem [#allocation2], %s431
        // Predicated region
        $region49: #{tpu_custom_call.1} parent=47 // pred_check
          %p433 = pneg %p191
        $region50: #{tpu_custom_call.1} parent=47 // pred_check_branch
          %435 = sbr.rel (%p433) target = $region52
        $region51: #{tpu_custom_call.1} parent=47 // pred_region
          %437 = vsyncadd %s429, 0
          %s438 = smul.addr %s21, 8
          %s439 = scalar_lea.hbm %s7, %s438
          %s441 = sshll.u32 %s432, 4
          %s442 = int_to_ptr.vmem [resolvable:$true] %s441
          %s443 = sshll.u32 %s439, 4
          %s444 = int_to_ptr.hbm [resolvable:$true] %s443
          %446 = dma.vmem_to_hbm [thread:$0]  %s442, 128, %s444, %s429
        $region52: #{tpu_custom_call.1} parent=47 // pred_fallthru
          _
      $region48: #{tpu_custom_call.1} parent=5 // pred_fallthru
        _
      %p447 = scmp.le.s32.totalorder 2, %s16
      // Predicated region
      $region53: #{tpu_custom_call.1} parent=5 // pred_check
        %p448 = pneg %p447
      $region54: #{tpu_custom_call.1} parent=5 // pred_check_branch
        %450 = sbr.rel (%p448) target = $region56
      $region55: #{tpu_custom_call.1} parent=5 // pred_region
        %s451 = ssub.s32 %s16, 2
        // Predicated region
        $region57: #{tpu_custom_call.1} parent=55 // pred_check
          %p452 = pneg %p197
        $region58: #{tpu_custom_call.1} parent=55 // pred_check_branch
          %454 = sbr.rel (%p452) target = $region60
        $region59: #{tpu_custom_call.1} parent=55 // pred_region
          %s455 = sand.u32 %s182, 1
          %s456 = scalar_lea.sflag [#allocation3], %s455
          %s457 = sand.u32 %s182, 1
          %s458 = smul.addr %s457, 8
          %s459 = scalar_lea.vmem [#allocation2], %s458
          %461 = dma.done %s456, 128
        $region60: #{tpu_custom_call.1} parent=55 // pred_fallthru
          _
      $region56: #{tpu_custom_call.1} parent=5 // pred_fallthru
        _
    $region6: #{tpu_custom_call.1} parent=1 // loop_footer
      %s20 = sadd.s32 1, %s16
    $region7: #{tpu_custom_call.1} parent=1 // loop_footer_branch
      %15 = sbr.rel target = $region3
    $region8: #{tpu_custom_call.1} parent=1 // loop_exit
      _
    %462 = vsyncpa [#allocation3], 1
    %s463 = scalar_lea.sflag [#allocation3], 1
    %464 = vsyncpa %s463, 1

</llo_original>
